<compile_context>
chip_gen: v6e
topology: v6e:2x2x1
jax: 0.10.0
libtpu: 0.0.40
codegen_flags: <defaults>
</compile_context>

<pallas_src>
import math
from functools import partial

import jax
import jax.numpy as jnp
from jax.experimental import pallas as pl
from jax.experimental.pallas import tpu as pltpu


def bilstm_kernel(x_ref, wih_ref, whh_ref, b_ref, out_ref, *, T, B, H):
    """Fused bidirectional LSTM: both directions interleaved in one serial chain.

    x_ref   : (T*B, 2I) bf16 — row s*B+b = [x[t=s, b] | x[t=T-1-s, b]]
    wih_ref : (2I, 8H)  bf16 — block-diag input weights, fused gate columns
    whh_ref : (2H, 8H)  bf16 — block-diag recurrent weights
    b_ref   : (1, 8H)   f32  — pre-summed biases
    out_ref : (T*B, 2H) f32  — row block s = [h_fwd(t=s) | h_bwd(t=T-1-s)]

    Fused gate-column order (width H each):
        [i_fwd, i_bwd, f_fwd, f_bwd, o_fwd, o_bwd, g_fwd, g_bwd]
    """
    # ---- Prologue (off the serial chain): input projection for all T steps and
    # both directions in ONE MXU matmul.  Kept flat as a value.
    gx = jnp.dot(x_ref[...], wih_ref[...],
                 preferred_element_type=jnp.float32) + b_ref[...]      # (T*B, 8H) f32
    w_hh = whh_ref[...]                                                 # (2H, 8H) bf16

    # Recurrent carries live as values (vregs), never round-tripped through VMEM.
    h = jnp.zeros((B, 2 * H), jnp.float32)
    c = jnp.zeros((B, 2 * H), jnp.float32)

    outs = []
    for s in range(T):  # static full unroll (T small); every index is static
        gates = gx[s * B:(s + 1) * B, :] + jnp.dot(
            h.astype(jnp.bfloat16), w_hh,
            preferred_element_type=jnp.float32)                         # (B, 8H) f32
        sig = jax.nn.sigmoid(gates[:, :6 * H])   # i|f|o, both directions at once
        g = jnp.tanh(gates[:, 6 * H:])           # g,    both directions at once
        i_g = sig[:, 0:2 * H]
        f_g = sig[:, 2 * H:4 * H]
        o_g = sig[:, 4 * H:6 * H]
        c = f_g * c + i_g * g                    # (B, 2H): fwd + bwd in one update
        h = o_g * jnp.tanh(c)
        outs.append(h)

    # ---- Epilogue: single bulk store (no masked per-step stores on the chain).
    out_ref[...] = jnp.concatenate(outs, axis=0)


def _split_gates(w, H):
    """Columns in PyTorch gate order [i, f, g, o] -> (i, f, o, g)."""
    return w[..., 0:H], w[..., H:2 * H], w[..., 3 * H:4 * H], w[..., 2 * H:3 * H]


def prep_kernel_operands(x, params):
    """Build the fused / block-diagonal kernel operands from PyTorch-style params."""
    B, T, I = x.shape
    H = params["w_hh"].shape[1]

    # Rows hold [x[t] | x[T-1-t]] so forward and backward share a row block and
    # the recurrence never needs a dynamic (reversed) time index.
    x_tm = jnp.transpose(x, (1, 0, 2))                          # (T, B, I)
    x_both = jnp.concatenate([x_tm, x_tm[::-1]], axis=-1)       # (T, B, 2I)
    x_both = x_both.reshape(T * B, 2 * I).astype(jnp.bfloat16)

    def blockdiag(w_f, w_b, dtype):
        # w_f / w_b: (K, 4H) in [i,f,g,o] order -> (2K, 8H) block-diag, fused order.
        i_f, f_f, o_f, g_f = _split_gates(w_f, H)
        i_b, f_b, o_b, g_b = _split_gates(w_b, H)
        z = jnp.zeros_like(i_f)
        top = jnp.concatenate([i_f, z, f_f, z, o_f, z, g_f, z], axis=1)
        bot = jnp.concatenate([z, i_b, z, f_b, z, o_b, z, g_b], axis=1)
        return jnp.concatenate([top, bot], axis=0).astype(dtype)

    w_ih_blk = blockdiag(params["w_ih"][0], params["w_ih"][1], jnp.bfloat16)  # (2I, 8H)
    w_hh_blk = blockdiag(params["w_hh"][0], params["w_hh"][1], jnp.bfloat16)  # (2H, 8H)

    bi_f, bf_f, bo_f, bg_f = _split_gates(params["b"][0], H)    # (1, H) each
    bi_b, bf_b, bo_b, bg_b = _split_gates(params["b"][1], H)
    bias = jnp.concatenate([bi_f, bi_b, bf_f, bf_b, bo_f, bo_b, bg_f, bg_b],
                           axis=1).astype(jnp.float32)           # (1, 8H)
    return x_both, w_ih_blk, w_hh_blk, bias


def my_lstm_forward(x, params):
    """x: (B, T, input_size), batch_first — matches PyTorch forward(inputs)."""
    B, T, I = x.shape
    H = params["w_hh"].shape[1]

    x_both, w_ih_blk, w_hh_blk, bias = prep_kernel_operands(x, params)

    h_flat = pl.pallas_call(
        partial(bilstm_kernel, T=T, B=B, H=H),
        out_shape=jax.ShapeDtypeStruct((T * B, 2 * H), jnp.float32),
        in_specs=[pl.BlockSpec(memory_space=pltpu.MemorySpace.VMEM)] * 4,
        out_specs=pl.BlockSpec(memory_space=pltpu.MemorySpace.VMEM),
    )(x_both, w_ih_blk, w_hh_blk, bias)

    # Row block s = [h_fwd(t=s) | h_bwd(t=T-1-s)]  ->  un-reverse the bwd half.
    h_steps = h_flat.reshape(T, B, 2 * H)
    lstm_out = jnp.concatenate([h_steps[:, :, :H], h_steps[::-1, :, H:]], axis=-1)
    lstm_out = jnp.transpose(lstm_out, (1, 0, 2))                 # (B, T, 2H)

    # Linear head in plain XLA (per perf review: far below MXU granularity).
    return jnp.einsum("btk,ko->bto", lstm_out, params["w_lin"],
                      preferred_element_type=jnp.float32) + params["b_lin"]


def init_params(key, input_size, hidden_size, output_size):
    """Deterministic init matching PyTorch's U(-1/sqrt(fan), 1/sqrt(fan)) scheme.

    LSTM weights are direction-stacked and pre-transposed: (2, I, 4H)/(2, H, 4H),
    gate order [i, f, g, o]; the two PyTorch biases are pre-summed per direction.
    The fused/block-diagonal kernel layout is derived in prep_kernel_operands.
    """
    H = hidden_size
    bound_lstm = 1.0 / math.sqrt(H)
    bound_lin = 1.0 / math.sqrt(2 * H)
    ks = jax.random.split(key, 10)
    u = lambda k, shape, b: jax.random.uniform(k, shape, jnp.float32, -b, b)
    return {
        "w_ih": jnp.stack([u(ks[0], (input_size, 4 * H), bound_lstm),
                           u(ks[4], (input_size, 4 * H), bound_lstm)]),      # (2, I, 4H)
        "w_hh": jnp.stack([u(ks[1], (H, 4 * H), bound_lstm),
                           u(ks[5], (H, 4 * H), bound_lstm)]),               # (2, H, 4H)
        "b": jnp.stack([u(ks[2], (1, 4 * H), bound_lstm) + u(ks[3], (1, 4 * H), bound_lstm),
                        u(ks[6], (1, 4 * H), bound_lstm) + u(ks[7], (1, 4 * H), bound_lstm)]),  # (2,1,4H)
        "w_lin": u(ks[8], (2 * H, output_size), bound_lin),                  # (2H, O)
        "b_lin": u(ks[9], (1, output_size), bound_lin),                      # (1, O)
    }


if __name__ == "__main__":
    # small shapes consistent with the module: batch=2, seq=8, input=4, hidden=32, out=5
    B, T, I, H, O = 2, 8, 4, 32, 5
    key = jax.random.PRNGKey(0)
    kp, kx = jax.random.split(key)
    params = init_params(kp, I, H, O)
    x = jax.random.normal(kx, (B, T, I), jnp.float32)

    out = my_lstm_forward(x, params)
    jax.block_until_ready(out)
    assert out.shape == (B, T, O) and out.dtype == jnp.float32
    print("KERNEL_OK")
</pallas_src>

<mosaic_0001>
module attributes {stable_mosaic.version = 11 : i64} {
  func.func @bilstm_kernel(%arg0: memref<16x8xbf16, #tpu.memory_space<vmem>>, %arg1: memref<8x256xbf16, #tpu.memory_space<vmem>>, %arg2: memref<64x256xbf16, #tpu.memory_space<vmem>>, %arg3: memref<1x256xf32, #tpu.memory_space<vmem>>, %arg4: memref<16x64xf32, #tpu.memory_space<vmem>>) attributes {dimension_semantics = [], scalar_prefetch = 0 : i64, scratch_operands = 0 : i64, tpu.core_type = #tpu.core_type<tc>} {
    %c0 = arith.constant 0 : index
    %c0_0 = arith.constant 0 : index
    %0 = vector.load %arg0[%c0, %c0_0] : memref<16x8xbf16, #tpu.memory_space<vmem>>, vector<16x8xbf16>
    %c0_1 = arith.constant 0 : index
    %c0_2 = arith.constant 0 : index
    %1 = vector.load %arg1[%c0_1, %c0_2] : memref<8x256xbf16, #tpu.memory_space<vmem>>, vector<8x256xbf16>
    %cst = arith.constant dense<0.000000e+00> : vector<16x256xf32>
    %2 = tpu.matmul %0, %1, %cst {dimension_numbers = #tpu.dot_dimension_numbers<[1], [0], [0], [1], [0, 0, 1, 1], [], []>} : vector<16x8xbf16>, vector<8x256xbf16>, vector<16x256xf32> -> vector<16x256xf32>
    %c0_3 = arith.constant 0 : index
    %c0_4 = arith.constant 0 : index
    %3 = vector.load %arg3[%c0_3, %c0_4] : memref<1x256xf32, #tpu.memory_space<vmem>>, vector<1x256xf32>
    %4 = vector.broadcast %3 : vector<1x256xf32> to vector<16x256xf32>
    %5 = arith.addf %2, %4 : vector<16x256xf32>
    %c0_5 = arith.constant 0 : index
    %c0_6 = arith.constant 0 : index
    %6 = vector.load %arg2[%c0_5, %c0_6] : memref<64x256xbf16, #tpu.memory_space<vmem>>, vector<64x256xbf16>
    %cst_7 = arith.constant 0.000000e+00 : f32
    %7 = vector.broadcast %cst_7 : f32 to vector<2x64xf32>
    %cst_8 = arith.constant 0.000000e+00 : f32
    %8 = vector.broadcast %cst_8 : f32 to vector<2x64xf32>
    %9 = vector.extract_strided_slice %5 {offsets = [0, 0], sizes = [2, 256], strides = [1, 1]} : vector<16x256xf32> to vector<2x256xf32>
    %10 = arith.truncf %7 : vector<2x64xf32> to vector<2x64xbf16>
    %cst_9 = arith.constant dense<0.000000e+00> : vector<2x256xf32>
    %11 = tpu.matmul %10, %6, %cst_9 {dimension_numbers = #tpu.dot_dimension_numbers<[1], [0], [0], [1], [0, 0, 1, 1], [], []>} : vector<2x64xbf16>, vector<64x256xbf16>, vector<2x256xf32> -> vector<2x256xf32>
    %12 = arith.addf %9, %11 : vector<2x256xf32>
    %13 = vector.extract_strided_slice %12 {offsets = [0, 0], sizes = [2, 192], strides = [1, 1]} : vector<2x256xf32> to vector<2x192xf32>
    %14 = arith.negf %13 : vector<2x192xf32>
    %15 = math.exp %14 : vector<2x192xf32>
    %cst_10 = arith.constant 1.000000e+00 : f32
    %16 = vector.broadcast %cst_10 : f32 to vector<2x192xf32>
    %17 = arith.addf %16, %15 : vector<2x192xf32>
    %18 = arith.divf %16, %17 : vector<2x192xf32>
    %19 = vector.extract_strided_slice %12 {offsets = [0, 192], sizes = [2, 64], strides = [1, 1]} : vector<2x256xf32> to vector<2x64xf32>
    %20 = math.tanh %19 : vector<2x64xf32>
    %21 = vector.extract_strided_slice %18 {offsets = [0, 0], sizes = [2, 64], strides = [1, 1]} : vector<2x192xf32> to vector<2x64xf32>
    %22 = vector.extract_strided_slice %18 {offsets = [0, 64], sizes = [2, 64], strides = [1, 1]} : vector<2x192xf32> to vector<2x64xf32>
    %23 = vector.extract_strided_slice %18 {offsets = [0, 128], sizes = [2, 64], strides = [1, 1]} : vector<2x192xf32> to vector<2x64xf32>
    %24 = arith.mulf %22, %8 : vector<2x64xf32>
    %25 = arith.mulf %21, %20 : vector<2x64xf32>
    %26 = arith.addf %24, %25 : vector<2x64xf32>
    %27 = math.tanh %26 : vector<2x64xf32>
    %28 = arith.mulf %23, %27 : vector<2x64xf32>
    %29 = vector.extract_strided_slice %5 {offsets = [2, 0], sizes = [2, 256], strides = [1, 1]} : vector<16x256xf32> to vector<2x256xf32>
    %30 = arith.truncf %28 : vector<2x64xf32> to vector<2x64xbf16>
    %cst_11 = arith.constant dense<0.000000e+00> : vector<2x256xf32>
    %31 = tpu.matmul %30, %6, %cst_11 {dimension_numbers = #tpu.dot_dimension_numbers<[1], [0], [0], [1], [0, 0, 1, 1], [], []>} : vector<2x64xbf16>, vector<64x256xbf16>, vector<2x256xf32> -> vector<2x256xf32>
    %32 = arith.addf %29, %31 : vector<2x256xf32>
    %33 = vector.extract_strided_slice %32 {offsets = [0, 0], sizes = [2, 192], strides = [1, 1]} : vector<2x256xf32> to vector<2x192xf32>
    %34 = arith.negf %33 : vector<2x192xf32>
    %35 = math.exp %34 : vector<2x192xf32>
    %cst_12 = arith.constant 1.000000e+00 : f32
    %36 = vector.broadcast %cst_12 : f32 to vector<2x192xf32>
    %37 = arith.addf %36, %35 : vector<2x192xf32>
    %38 = arith.divf %36, %37 : vector<2x192xf32>
    %39 = vector.extract_strided_slice %32 {offsets = [0, 192], sizes = [2, 64], strides = [1, 1]} : vector<2x256xf32> to vector<2x64xf32>
    %40 = math.tanh %39 : vector<2x64xf32>
    %41 = vector.extract_strided_slice %38 {offsets = [0, 0], sizes = [2, 64], strides = [1, 1]} : vector<2x192xf32> to vector<2x64xf32>
    %42 = vector.extract_strided_slice %38 {offsets = [0, 64], sizes = [2, 64], strides = [1, 1]} : vector<2x192xf32> to vector<2x64xf32>
    %43 = vector.extract_strided_slice %38 {offsets = [0, 128], sizes = [2, 64], strides = [1, 1]} : vector<2x192xf32> to vector<2x64xf32>
    %44 = arith.mulf %42, %26 : vector<2x64xf32>
    %45 = arith.mulf %41, %40 : vector<2x64xf32>
    %46 = arith.addf %44, %45 : vector<2x64xf32>
    %47 = math.tanh %46 : vector<2x64xf32>
    %48 = arith.mulf %43, %47 : vector<2x64xf32>
    %49 = vector.extract_strided_slice %5 {offsets = [4, 0], sizes = [2, 256], strides = [1, 1]} : vector<16x256xf32> to vector<2x256xf32>
    %50 = arith.truncf %48 : vector<2x64xf32> to vector<2x64xbf16>
    %cst_13 = arith.constant dense<0.000000e+00> : vector<2x256xf32>
    %51 = tpu.matmul %50, %6, %cst_13 {dimension_numbers = #tpu.dot_dimension_numbers<[1], [0], [0], [1], [0, 0, 1, 1], [], []>} : vector<2x64xbf16>, vector<64x256xbf16>, vector<2x256xf32> -> vector<2x256xf32>
    %52 = arith.addf %49, %51 : vector<2x256xf32>
    %53 = vector.extract_strided_slice %52 {offsets = [0, 0], sizes = [2, 192], strides = [1, 1]} : vector<2x256xf32> to vector<2x192xf32>
    %54 = arith.negf %53 : vector<2x192xf32>
    %55 = math.exp %54 : vector<2x192xf32>
    %cst_14 = arith.constant 1.000000e+00 : f32
    %56 = vector.broadcast %cst_14 : f32 to vector<2x192xf32>
    %57 = arith.addf %56, %55 : vector<2x192xf32>
    %58 = arith.divf %56, %57 : vector<2x192xf32>
    %59 = vector.extract_strided_slice %52 {offsets = [0, 192], sizes = [2, 64], strides = [1, 1]} : vector<2x256xf32> to vector<2x64xf32>
    %60 = math.tanh %59 : vector<2x64xf32>
    %61 = vector.extract_strided_slice %58 {offsets = [0, 0], sizes = [2, 64], strides = [1, 1]} : vector<2x192xf32> to vector<2x64xf32>
    %62 = vector.extract_strided_slice %58 {offsets = [0, 64], sizes = [2, 64], strides = [1, 1]} : vector<2x192xf32> to vector<2x64xf32>
    %63 = vector.extract_strided_slice %58 {offsets = [0, 128], sizes = [2, 64], strides = [1, 1]} : vector<2x192xf32> to vector<2x64xf32>
    %64 = arith.mulf %62, %46 : vector<2x64xf32>
    %65 = arith.mulf %61, %60 : vector<2x64xf32>
    %66 = arith.addf %64, %65 : vector<2x64xf32>
    %67 = math.tanh %66 : vector<2x64xf32>
    %68 = arith.mulf %63, %67 : vector<2x64xf32>
    %69 = vector.extract_strided_slice %5 {offsets = [6, 0], sizes = [2, 256], strides = [1, 1]} : vector<16x256xf32> to vector<2x256xf32>
    %70 = arith.truncf %68 : vector<2x64xf32> to vector<2x64xbf16>
    %cst_15 = arith.constant dense<0.000000e+00> : vector<2x256xf32>
    %71 = tpu.matmul %70, %6, %cst_15 {dimension_numbers = #tpu.dot_dimension_numbers<[1], [0], [0], [1], [0, 0, 1, 1], [], []>} : vector<2x64xbf16>, vector<64x256xbf16>, vector<2x256xf32> -> vector<2x256xf32>
    %72 = arith.addf %69, %71 : vector<2x256xf32>
    %73 = vector.extract_strided_slice %72 {offsets = [0, 0], sizes = [2, 192], strides = [1, 1]} : vector<2x256xf32> to vector<2x192xf32>
    %74 = arith.negf %73 : vector<2x192xf32>
    %75 = math.exp %74 : vector<2x192xf32>
    %cst_16 = arith.constant 1.000000e+00 : f32
    %76 = vector.broadcast %cst_16 : f32 to vector<2x192xf32>
    %77 = arith.addf %76, %75 : vector<2x192xf32>
    %78 = arith.divf %76, %77 : vector<2x192xf32>
    %79 = vector.extract_strided_slice %72 {offsets = [0, 192], sizes = [2, 64], strides = [1, 1]} : vector<2x256xf32> to vector<2x64xf32>
    %80 = math.tanh %79 : vector<2x64xf32>
    %81 = vector.extract_strided_slice %78 {offsets = [0, 0], sizes = [2, 64], strides = [1, 1]} : vector<2x192xf32> to vector<2x64xf32>
    %82 = vector.extract_strided_slice %78 {offsets = [0, 64], sizes = [2, 64], strides = [1, 1]} : vector<2x192xf32> to vector<2x64xf32>
    %83 = vector.extract_strided_slice %78 {offsets = [0, 128], sizes = [2, 64], strides = [1, 1]} : vector<2x192xf32> to vector<2x64xf32>
    %84 = arith.mulf %82, %66 : vector<2x64xf32>
    %85 = arith.mulf %81, %80 : vector<2x64xf32>
    %86 = arith.addf %84, %85 : vector<2x64xf32>
    %87 = math.tanh %86 : vector<2x64xf32>
    %88 = arith.mulf %83, %87 : vector<2x64xf32>
    %89 = vector.extract_strided_slice %5 {offsets = [8, 0], sizes = [2, 256], strides = [1, 1]} : vector<16x256xf32> to vector<2x256xf32>
    %90 = arith.truncf %88 : vector<2x64xf32> to vector<2x64xbf16>
    %cst_17 = arith.constant dense<0.000000e+00> : vector<2x256xf32>
    %91 = tpu.matmul %90, %6, %cst_17 {dimension_numbers = #tpu.dot_dimension_numbers<[1], [0], [0], [1], [0, 0, 1, 1], [], []>} : vector<2x64xbf16>, vector<64x256xbf16>, vector<2x256xf32> -> vector<2x256xf32>
    %92 = arith.addf %89, %91 : vector<2x256xf32>
    %93 = vector.extract_strided_slice %92 {offsets = [0, 0], sizes = [2, 192], strides = [1, 1]} : vector<2x256xf32> to vector<2x192xf32>
    %94 = arith.negf %93 : vector<2x192xf32>
    %95 = math.exp %94 : vector<2x192xf32>
    %cst_18 = arith.constant 1.000000e+00 : f32
    %96 = vector.broadcast %cst_18 : f32 to vector<2x192xf32>
    %97 = arith.addf %96, %95 : vector<2x192xf32>
    %98 = arith.divf %96, %97 : vector<2x192xf32>
    %99 = vector.extract_strided_slice %92 {offsets = [0, 192], sizes = [2, 64], strides = [1, 1]} : vector<2x256xf32> to vector<2x64xf32>
    %100 = math.tanh %99 : vector<2x64xf32>
    %101 = vector.extract_strided_slice %98 {offsets = [0, 0], sizes = [2, 64], strides = [1, 1]} : vector<2x192xf32> to vector<2x64xf32>
    %102 = vector.extract_strided_slice %98 {offsets = [0, 64], sizes = [2, 64], strides = [1, 1]} : vector<2x192xf32> to vector<2x64xf32>
    %103 = vector.extract_strided_slice %98 {offsets = [0, 128], sizes = [2, 64], strides = [1, 1]} : vector<2x192xf32> to vector<2x64xf32>
    %104 = arith.mulf %102, %86 : vector<2x64xf32>
    %105 = arith.mulf %101, %100 : vector<2x64xf32>
    %106 = arith.addf %104, %105 : vector<2x64xf32>
    %107 = math.tanh %106 : vector<2x64xf32>
    %108 = arith.mulf %103, %107 : vector<2x64xf32>
    %109 = vector.extract_strided_slice %5 {offsets = [10, 0], sizes = [2, 256], strides = [1, 1]} : vector<16x256xf32> to vector<2x256xf32>
    %110 = arith.truncf %108 : vector<2x64xf32> to vector<2x64xbf16>
    %cst_19 = arith.constant dense<0.000000e+00> : vector<2x256xf32>
    %111 = tpu.matmul %110, %6, %cst_19 {dimension_numbers = #tpu.dot_dimension_numbers<[1], [0], [0], [1], [0, 0, 1, 1], [], []>} : vector<2x64xbf16>, vector<64x256xbf16>, vector<2x256xf32> -> vector<2x256xf32>
    %112 = arith.addf %109, %111 : vector<2x256xf32>
    %113 = vector.extract_strided_slice %112 {offsets = [0, 0], sizes = [2, 192], strides = [1, 1]} : vector<2x256xf32> to vector<2x192xf32>
    %114 = arith.negf %113 : vector<2x192xf32>
    %115 = math.exp %114 : vector<2x192xf32>
    %cst_20 = arith.constant 1.000000e+00 : f32
    %116 = vector.broadcast %cst_20 : f32 to vector<2x192xf32>
    %117 = arith.addf %116, %115 : vector<2x192xf32>
    %118 = arith.divf %116, %117 : vector<2x192xf32>
    %119 = vector.extract_strided_slice %112 {offsets = [0, 192], sizes = [2, 64], strides = [1, 1]} : vector<2x256xf32> to vector<2x64xf32>
    %120 = math.tanh %119 : vector<2x64xf32>
    %121 = vector.extract_strided_slice %118 {offsets = [0, 0], sizes = [2, 64], strides = [1, 1]} : vector<2x192xf32> to vector<2x64xf32>
    %122 = vector.extract_strided_slice %118 {offsets = [0, 64], sizes = [2, 64], strides = [1, 1]} : vector<2x192xf32> to vector<2x64xf32>
    %123 = vector.extract_strided_slice %118 {offsets = [0, 128], sizes = [2, 64], strides = [1, 1]} : vector<2x192xf32> to vector<2x64xf32>
    %124 = arith.mulf %122, %106 : vector<2x64xf32>
    %125 = arith.mulf %121, %120 : vector<2x64xf32>
    %126 = arith.addf %124, %125 : vector<2x64xf32>
    %127 = math.tanh %126 : vector<2x64xf32>
    %128 = arith.mulf %123, %127 : vector<2x64xf32>
    %129 = vector.extract_strided_slice %5 {offsets = [12, 0], sizes = [2, 256], strides = [1, 1]} : vector<16x256xf32> to vector<2x256xf32>
    %130 = arith.truncf %128 : vector<2x64xf32> to vector<2x64xbf16>
    %cst_21 = arith.constant dense<0.000000e+00> : vector<2x256xf32>
    %131 = tpu.matmul %130, %6, %cst_21 {dimension_numbers = #tpu.dot_dimension_numbers<[1], [0], [0], [1], [0, 0, 1, 1], [], []>} : vector<2x64xbf16>, vector<64x256xbf16>, vector<2x256xf32> -> vector<2x256xf32>
    %132 = arith.addf %129, %131 : vector<2x256xf32>
    %133 = vector.extract_strided_slice %132 {offsets = [0, 0], sizes = [2, 192], strides = [1, 1]} : vector<2x256xf32> to vector<2x192xf32>
    %134 = arith.negf %133 : vector<2x192xf32>
    %135 = math.exp %134 : vector<2x192xf32>
    %cst_22 = arith.constant 1.000000e+00 : f32
    %136 = vector.broadcast %cst_22 : f32 to vector<2x192xf32>
    %137 = arith.addf %136, %135 : vector<2x192xf32>
    %138 = arith.divf %136, %137 : vector<2x192xf32>
    %139 = vector.extract_strided_slice %132 {offsets = [0, 192], sizes = [2, 64], strides = [1, 1]} : vector<2x256xf32> to vector<2x64xf32>
    %140 = math.tanh %139 : vector<2x64xf32>
    %141 = vector.extract_strided_slice %138 {offsets = [0, 0], sizes = [2, 64], strides = [1, 1]} : vector<2x192xf32> to vector<2x64xf32>
    %142 = vector.extract_strided_slice %138 {offsets = [0, 64], sizes = [2, 64], strides = [1, 1]} : vector<2x192xf32> to vector<2x64xf32>
    %143 = vector.extract_strided_slice %138 {offsets = [0, 128], sizes = [2, 64], strides = [1, 1]} : vector<2x192xf32> to vector<2x64xf32>
    %144 = arith.mulf %142, %126 : vector<2x64xf32>
    %145 = arith.mulf %141, %140 : vector<2x64xf32>
    %146 = arith.addf %144, %145 : vector<2x64xf32>
    %147 = math.tanh %146 : vector<2x64xf32>
    %148 = arith.mulf %143, %147 : vector<2x64xf32>
    %149 = vector.extract_strided_slice %5 {offsets = [14, 0], sizes = [2, 256], strides = [1, 1]} : vector<16x256xf32> to vector<2x256xf32>
    %150 = arith.truncf %148 : vector<2x64xf32> to vector<2x64xbf16>
    %cst_23 = arith.constant dense<0.000000e+00> : vector<2x256xf32>
    %151 = tpu.matmul %150, %6, %cst_23 {dimension_numbers = #tpu.dot_dimension_numbers<[1], [0], [0], [1], [0, 0, 1, 1], [], []>} : vector<2x64xbf16>, vector<64x256xbf16>, vector<2x256xf32> -> vector<2x256xf32>
    %152 = arith.addf %149, %151 : vector<2x256xf32>
    %153 = vector.extract_strided_slice %152 {offsets = [0, 0], sizes = [2, 192], strides = [1, 1]} : vector<2x256xf32> to vector<2x192xf32>
    %154 = arith.negf %153 : vector<2x192xf32>
    %155 = math.exp %154 : vector<2x192xf32>
    %cst_24 = arith.constant 1.000000e+00 : f32
    %156 = vector.broadcast %cst_24 : f32 to vector<2x192xf32>
    %157 = arith.addf %156, %155 : vector<2x192xf32>
    %158 = arith.divf %156, %157 : vector<2x192xf32>
    %159 = vector.extract_strided_slice %152 {offsets = [0, 192], sizes = [2, 64], strides = [1, 1]} : vector<2x256xf32> to vector<2x64xf32>
    %160 = math.tanh %159 : vector<2x64xf32>
    %161 = vector.extract_strided_slice %158 {offsets = [0, 0], sizes = [2, 64], strides = [1, 1]} : vector<2x192xf32> to vector<2x64xf32>
    %162 = vector.extract_strided_slice %158 {offsets = [0, 64], sizes = [2, 64], strides = [1, 1]} : vector<2x192xf32> to vector<2x64xf32>
    %163 = vector.extract_strided_slice %158 {offsets = [0, 128], sizes = [2, 64], strides = [1, 1]} : vector<2x192xf32> to vector<2x64xf32>
    %164 = arith.mulf %162, %146 : vector<2x64xf32>
    %165 = arith.mulf %161, %160 : vector<2x64xf32>
    %166 = arith.addf %164, %165 : vector<2x64xf32>
    %167 = math.tanh %166 : vector<2x64xf32>
    %168 = arith.mulf %163, %167 : vector<2x64xf32>
    %169 = tpu.concatenate %28, %48, %68, %88, %108, %128, %148, %168 in 0 : vector<2x64xf32>, vector<2x64xf32>, vector<2x64xf32>, vector<2x64xf32>, vector<2x64xf32>, vector<2x64xf32>, vector<2x64xf32>, vector<2x64xf32> -> vector<16x64xf32>
    %c0_25 = arith.constant 0 : index
    %c0_26 = arith.constant 0 : index
    %170 = vector.load %arg4[%c0_25, %c0_26] : memref<16x64xf32, #tpu.memory_space<vmem>>, vector<16x64xf32>
    tpu.vector_store %arg4[%c0_25, %c0_26], %169 {strides = array<i32>} : memref<16x64xf32, #tpu.memory_space<vmem>>, vector<16x64xf32>,
    return
  }
}

</mosaic_0001>

<llo_original>
// kernel: tpu_custom_call.1
$region0: #{tpu_custom_call.1}
  #allocation0 [shape = 'u32[]', space=smem, size = 0x4, offset = 0x4, fixed_abs, tag = 'smem constant byte address 0x4 - core index']
  #allocation1 [shape = 'u32[144,128]{1,0:T(1,128)}', space=vmem, size = 0x12000, scoped, tag = 'internal scratch']
  %s0 = inlined_call_operand.vmem [shape: bf16[16,8], index: 0, kind: input, shape index: {}]
  %s1 = inlined_call_operand.vmem [shape: bf16[8,256], index: 1, kind: input, shape index: {}]
  %s2 = inlined_call_operand.hbm [shape: bf16[64,256], index: 2, kind: input, shape index: {}]
  %s3 = inlined_call_operand.vmem [shape: f32[1,256], index: 3, kind: input, shape index: {}]
  %s4 = inlined_call_operand.hbm [shape: f32[16,64], index: 4, kind: output, shape index: {}]
  %s5 = sld [smem:[#allocation0]]
  $region30: #{tpu_custom_call.1} parent=0
    _
  %s7 = ssub.s32 1, %s5
  %s8 = scalar_select 0, %s7, %s5
  $region1: #{tpu_custom_call.1} parent=0
    #allocation2 [shape = 'u8[32768]{0}', space=vmem, size = 0x8000, scoped, tag = 'input window, operand 2, single buffered']
    #allocation3 [shape = 's32[1]{0}', space=sflag, size = 0x4, scoped, tag = 'scoped memory for tpu_custom_call.1']
    #allocation4 [shape = 's32[1]{0}', space=sflag, size = 0x4, scoped, tag = 'scoped memory for tpu_custom_call.1']
    #allocation5 [shape = 'u8[8192]{0}', space=vmem, size = 0x2000, scoped, tag = 'output window, operand 0, single buffered']
    %9 = vsyncpa [#allocation3], 0
    %10 = vsyncpa [#allocation4], 0
    // Predicated region
    $region2: #{tpu_custom_call.1} parent=1 // pred_check
      _
    $region3: #{tpu_custom_call.1} parent=1 // pred_check_branch
      %12 = sbr.rel (0) target = $region5
    $region4: #{tpu_custom_call.1} parent=1 // pred_region
      _
    $region5: #{tpu_custom_call.1} parent=1 // pred_fallthru
      _
    // Predicated region
    $region6: #{tpu_custom_call.1} parent=1 // pred_check
      _
    $region7: #{tpu_custom_call.1} parent=1 // pred_check_branch
      %14 = sbr.rel (0) target = $region9
    $region8: #{tpu_custom_call.1} parent=1 // pred_region
      _
    $region9: #{tpu_custom_call.1} parent=1 // pred_fallthru
      _
    // Predicated region
    $region10: #{tpu_custom_call.1} parent=1 // pred_check
      _
    $region11: #{tpu_custom_call.1} parent=1 // pred_check_branch
      %16 = sbr.rel (0) target = $region13
    $region12: #{tpu_custom_call.1} parent=1 // pred_region
      %s18 = ssub.s32 1024, 1024
      %19 = vsyncadd [#allocation3], %s18
      %s20 = sshll.u32 [#allocation2], 4
      %s21 = int_to_ptr.vmem [resolvable:$true] %s20
      %26 = dma.hbm_to_vmem [thread:$0]  %s2, 1024, %s21, [#allocation3], 128, 128, 8
    $region13: #{tpu_custom_call.1} parent=1 // pred_fallthru
      _
    // Predicated region
    $region14: #{tpu_custom_call.1} parent=1 // pred_check
      _
    $region15: #{tpu_custom_call.1} parent=1 // pred_check_branch
      %28 = sbr.rel (0) target = $region17
    $region16: #{tpu_custom_call.1} parent=1 // pred_region
      _
    $region17: #{tpu_custom_call.1} parent=1 // pred_fallthru
      _
    // Predicated region
    $region18: #{tpu_custom_call.1} parent=1 // pred_check
      _
    $region19: #{tpu_custom_call.1} parent=1 // pred_check_branch
      %30 = sbr.rel (0) target = $region21
    $region20: #{tpu_custom_call.1} parent=1 // pred_region
      %31 = dma.done [#allocation3], 1024
    $region21: #{tpu_custom_call.1} parent=1 // pred_fallthru
      _
    %v33 = vld [vmem:[%s0] sm:$0xf]
    %v34 = vld [vmem:[%s0 + $0x4] sm:$0xf]
    %v35 = vld [vmem:[%s1] sm:$0xff]
    %v36 = vld [vmem:[%s3] sm:$0x3]
    %v38 = vlaneseq
    %v39 = vshrl.u32 %v38, 7
    %v40 = vsub.s32 0, %v39
    %v41 = vrot.slane %v36, %v40
    %v42 = vlaneseq
    %v43 = vshrl.u32 %v42, 7
    %v44 = vsub.s32 1, %v43
    %v45 = vrot.slane %v36, %v44
    %v50 = vunpack.c.l.b16 %v33
    %v51 = vunpack.c.l.b16 %v34
    %v52 = vpack.c.b16 %v51, %v50
    %v54 = vunpack.c.l.b16 %v35
    %v55 = vunpack.c.h.b16 %v35
    %v56 = vpack.c.b16 %v54, %v54
    %v57 = vpack.c.b16 %v55, %v55
    %vm58 = vcmask 64512
    %v60 = vsel %vm58, %v52, 0
    %vm62 = vcmask 1043456
    %v64 = vsel %vm62, %v56, 0
    %v67 = vsel %vm62, %v57, 0
    %69 = vmatprep.subr.bf16.mxu0 0
    %70 = vmatpush1.bf16.msra.mxu0 0
    %71 = vmatprep.subr.bf16.mxu0 0
    %72 = vmatpush1.bf16.msra.mxu0 0
    %73 = vmatprep.subr.bf16.mxu0 0
    %74 = vmatpush1.bf16.msra.mxu0 0
    %75 = vmatprep.subr.bf16.mxu0 0
    %76 = vmatpush1.bf16.msra.mxu0 0
    %77 = vmatprep.subr.bf16.mxu0 0
    %78 = vmatpush1.bf16.msra.mxu0 0
    %79 = vmatprep.subr.bf16.mxu0 0
    %80 = vmatpush1.bf16.msra.mxu0 0
    %81 = vmatprep.subr.bf16.mxu0 0
    %82 = vmatpush1.bf16.msra.mxu0 0
    %83 = vmatprep.subr.bf16.mxu0 %v67
    %84 = vmatpush1.bf16.msra.mxu0 %v64
    %85 = vmatprep.subr.bf16.mxu0 0
    %86 = vmatpush2.bf16.msra.mxu0 0
    %87 = vmatprep.subr.bf16.mxu0 0
    %88 = vmatpush2.bf16.msra.mxu0 0
    %89 = vmatprep.subr.bf16.mxu0 0
    %90 = vmatpush2.bf16.msra.mxu0 0
    %91 = vmatprep.subr.bf16.mxu0 0
    %92 = vmatpush2.bf16.msra.mxu0 0
    %93 = vmatprep.subr.bf16.mxu0 0
    %94 = vmatpush2.bf16.msra.mxu0 0
    %95 = vmatprep.subr.bf16.mxu0 0
    %96 = vmatpush2.bf16.msra.mxu0 0
    %97 = vmatprep.subr.bf16.mxu0 0
    %98 = vmatpush2.bf16.msra.mxu0 0
    %99 = vmatprep.subr.bf16.mxu0 0
    %100 = vmatpush2.bf16.msra.mxu0 0
    %101 = vmatprep.mubr.bf16.mxu0 0
    %102 = vmatmul.mubr.bf16.gmra.mxu0 %v60
    %v103 = vpop.f32.mrf.mxu0
    %v104 = vadd.f32 %v41, %v103
    %v105 = vpop.f32.mrf.mxu0
    %v106 = vadd.f32 %v45, %v105
    %v107 = vpop.f32.mrf.mxu0
    %v108 = vadd.f32 %v41, %v107
    %v109 = vpop.f32.mrf.mxu0
    %v110 = vadd.f32 %v45, %v109
    %111 = vdwg.mxu0
    %v112 = vld [vmem:[#allocation2] sm:$0xff]
    %v113 = vld [vmem:[#allocation2 + $0x8] sm:$0xff]
    %v114 = vld [vmem:[#allocation2 + $0x10] sm:$0xff]
    %v115 = vld [vmem:[#allocation2 + $0x18] sm:$0xff]
    %v116 = vld [vmem:[#allocation2 + $0x20] sm:$0xff]
    %v117 = vld [vmem:[#allocation2 + $0x28] sm:$0xff]
    %v118 = vld [vmem:[#allocation2 + $0x30] sm:$0xff]
    %v119 = vld [vmem:[#allocation2 + $0x38] sm:$0xff]
    %v128 = vunpack.c.l.b16 %v112
    %v129 = vunpack.c.h.b16 %v112
    %v130 = vunpack.c.l.b16 %v113
    %v131 = vunpack.c.h.b16 %v113
    %v132 = vunpack.c.l.b16 %v114
    %v133 = vunpack.c.h.b16 %v114
    %v134 = vunpack.c.l.b16 %v115
    %v135 = vunpack.c.h.b16 %v115
    %v136 = vunpack.c.l.b16 %v116
    %v137 = vunpack.c.h.b16 %v116
    %v138 = vunpack.c.l.b16 %v117
    %v139 = vunpack.c.h.b16 %v117
    %v140 = vunpack.c.l.b16 %v118
    %v141 = vunpack.c.h.b16 %v118
    %v142 = vunpack.c.l.b16 %v119
    %v143 = vunpack.c.h.b16 %v119
    %v144 = vpack.c.b16 %v130, %v128
    %v145 = vpack.c.b16 %v131, %v129
    %v146 = vpack.c.b16 %v134, %v132
    %v147 = vpack.c.b16 %v135, %v133
    %v148 = vpack.c.b16 %v138, %v136
    %v149 = vpack.c.b16 %v139, %v137
    %v150 = vpack.c.b16 %v142, %v140
    %v151 = vpack.c.b16 %v143, %v141
    %vm160 = vcmask 523264
    %v162 = vsel %vm160, 0, 0
    %164 = vmatprep.subr.bf16.mxu0 0
    %165 = vmatpush1.bf16.msra.mxu0 0
    %166 = vmatprep.subr.bf16.mxu0 0
    %167 = vmatpush1.bf16.msra.mxu0 0
    %168 = vmatprep.subr.bf16.mxu0 0
    %169 = vmatpush1.bf16.msra.mxu0 0
    %170 = vmatprep.subr.bf16.mxu0 0
    %171 = vmatpush1.bf16.msra.mxu0 0
    %172 = vmatprep.subr.bf16.mxu0 %v151
    %173 = vmatpush1.bf16.msra.mxu0 %v150
    %174 = vmatprep.subr.bf16.mxu0 %v149
    %175 = vmatpush1.bf16.msra.mxu0 %v148
    %176 = vmatprep.subr.bf16.mxu0 %v147
    %177 = vmatpush1.bf16.msra.mxu0 %v146
    %178 = vmatprep.subr.bf16.mxu0 %v145
    %179 = vmatpush1.bf16.msra.mxu0 %v144
    %180 = vmatprep.subr.bf16.mxu0 0
    %181 = vmatpush2.bf16.msra.mxu0 0
    %182 = vmatprep.subr.bf16.mxu0 0
    %183 = vmatpush2.bf16.msra.mxu0 0
    %184 = vmatprep.subr.bf16.mxu0 0
    %185 = vmatpush2.bf16.msra.mxu0 0
    %186 = vmatprep.subr.bf16.mxu0 0
    %187 = vmatpush2.bf16.msra.mxu0 0
    %188 = vmatprep.subr.bf16.mxu0 0
    %189 = vmatpush2.bf16.msra.mxu0 0
    %190 = vmatprep.subr.bf16.mxu0 0
    %191 = vmatpush2.bf16.msra.mxu0 0
    %192 = vmatprep.subr.bf16.mxu0 0
    %193 = vmatpush2.bf16.msra.mxu0 0
    %194 = vmatprep.subr.bf16.mxu0 0
    %195 = vmatpush2.bf16.msra.mxu0 0
    %196 = vmatprep.mubr.bf16.mxu0 0
    %197 = vmatmul.mubr.bf16.gmra.mxu0 %v162
    %v198 = vpop.f32.mrf.mxu0
    %v199 = vadd.f32 0.0, %v198
    %v200 = vpop.f32.mrf.mxu0
    %v201 = vadd.f32 0.0, %v200
    %v202 = vpop.f32.mrf.mxu0
    %v203 = vpop.f32.mrf.mxu0
    %204 = vdwg.mxu0
    %v205 = vadd.f32 %v104, %v199
    %v206 = vadd.f32 %v106, %v201
    %v207 = vxor.u32 %v205, 2147483648
    %v208 = vxor.u32 %v206, 2147483648
    %v209 = vmul.f32 %v207, 1.442695
    %v210 = vpow.pop %v209
    %v211 = vmul.f32 %v208, 1.442695
    %v212 = vpow.pop %v211
    %v213 = vadd.f32 %v210, 1.0
    %v214 = vadd.f32 %v212, 1.0
    %v215 = vrcp.pop %v213
    %v216 = vmul.f32 1.0, %v215
    %v217 = vrcp.pop %v214
    %v218 = vmul.f32 1.0, %v217
    %v219 = vtanh.pop %v206
    %v220 = vmul.f32 %v216, 0.0
    %222 = vrot.lane.b32.xlu0 %v219, 64
    %v223 = vpop.permute.xlu0 %222
    %v225 = vmul.f32 %v216, %v223
    %227 = vrot.lane.b32.xlu0 %v225, 64
    %v228 = vpop.permute.xlu0 %227
    %v230 = vadd.f32 %v220, %v228
    %v231 = vtanh.pop %v230
    %233 = vrot.lane.b32.xlu0 %v231, 64
    %v234 = vpop.permute.xlu0 %233
    %v236 = vmul.f32 %v218, %v234
    %v237 = vpack.c.bf16 %v236, %v236
    %v239 = vsel %vm160, %v237, 0
    %241 = vmatprep.subr.bf16.mxu0 0
    %242 = vmatpush1.bf16.msra.mxu0 0
    %243 = vmatprep.subr.bf16.mxu0 0
    %244 = vmatpush1.bf16.msra.mxu0 0
    %245 = vmatprep.subr.bf16.mxu0 0
    %246 = vmatpush1.bf16.msra.mxu0 0
    %247 = vmatprep.subr.bf16.mxu0 0
    %248 = vmatpush1.bf16.msra.mxu0 0
    %249 = vmatprep.subr.bf16.mxu0 %v151
    %250 = vmatpush1.bf16.msra.mxu0 %v150
    %251 = vmatprep.subr.bf16.mxu0 %v149
    %252 = vmatpush1.bf16.msra.mxu0 %v148
    %253 = vmatprep.subr.bf16.mxu0 %v147
    %254 = vmatpush1.bf16.msra.mxu0 %v146
    %255 = vmatprep.subr.bf16.mxu0 %v145
    %256 = vmatpush1.bf16.msra.mxu0 %v144
    %257 = vmatprep.subr.bf16.mxu0 0
    %258 = vmatpush2.bf16.msra.mxu0 0
    %259 = vmatprep.subr.bf16.mxu0 0
    %260 = vmatpush2.bf16.msra.mxu0 0
    %261 = vmatprep.subr.bf16.mxu0 0
    %262 = vmatpush2.bf16.msra.mxu0 0
    %263 = vmatprep.subr.bf16.mxu0 0
    %264 = vmatpush2.bf16.msra.mxu0 0
    %265 = vmatprep.subr.bf16.mxu0 0
    %266 = vmatpush2.bf16.msra.mxu0 0
    %267 = vmatprep.subr.bf16.mxu0 0
    %268 = vmatpush2.bf16.msra.mxu0 0
    %269 = vmatprep.subr.bf16.mxu0 0
    %270 = vmatpush2.bf16.msra.mxu0 0
    %271 = vmatprep.subr.bf16.mxu0 0
    %272 = vmatpush2.bf16.msra.mxu0 0
    %273 = vmatprep.mubr.bf16.mxu0 0
    %274 = vmatmul.mubr.bf16.gmra.mxu0 %v239
    %v275 = vpop.f32.mrf.mxu0
    %v276 = vadd.f32 0.0, %v275
    %v277 = vpop.f32.mrf.mxu0
    %v278 = vadd.f32 0.0, %v277
    %v279 = vpop.f32.mrf.mxu0
    %v280 = vpop.f32.mrf.mxu0
    %281 = vdwg.mxu0
    %v284 = vrot.slane %v276, 6
    %v285 = vrot.slane %v278, 6
    %v288 = vadd.f32 %v104, %v284
    %v289 = vadd.f32 %v106, %v285
    %v290 = vxor.u32 %v288, 2147483648
    %v291 = vxor.u32 %v289, 2147483648
    %v292 = vmul.f32 %v290, 1.442695
    %v293 = vpow.pop %v292
    %v294 = vmul.f32 %v291, 1.442695
    %v295 = vpow.pop %v294
    %v296 = vadd.f32 %v293, 1.0
    %v297 = vadd.f32 %v295, 1.0
    %v298 = vrcp.pop %v296
    %v299 = vmul.f32 1.0, %v298
    %v300 = vrcp.pop %v297
    %v301 = vmul.f32 1.0, %v300
    %v302 = vtanh.pop %v289
    %v304 = vrot.slane %v230, 6
    %v306 = vmul.f32 %v299, %v304
    %308 = vrot.lane.b32.xlu0 %v302, 64
    %v309 = vpop.permute.xlu0 %308
    %v311 = vmul.f32 %v299, %v309
    %313 = vrot.lane.b32.xlu0 %v311, 64
    %v314 = vpop.permute.xlu0 %313
    %v316 = vadd.f32 %v306, %v314
    %v317 = vtanh.pop %v316
    %319 = vrot.lane.b32.xlu0 %v317, 64
    %v320 = vpop.permute.xlu0 %319
    %v322 = vmul.f32 %v301, %v320
    %v323 = vpack.c.bf16 %v322, %v322
    %v325 = vrot.slane %v323, 1
    %v327 = vsel %vm160, %v325, 0
    %329 = vmatprep.subr.bf16.mxu0 0
    %330 = vmatpush1.bf16.msra.mxu0 0
    %331 = vmatprep.subr.bf16.mxu0 0
    %332 = vmatpush1.bf16.msra.mxu0 0
    %333 = vmatprep.subr.bf16.mxu0 0
    %334 = vmatpush1.bf16.msra.mxu0 0
    %335 = vmatprep.subr.bf16.mxu0 0
    %336 = vmatpush1.bf16.msra.mxu0 0
    %337 = vmatprep.subr.bf16.mxu0 %v151
    %338 = vmatpush1.bf16.msra.mxu0 %v150
    %339 = vmatprep.subr.bf16.mxu0 %v149
    %340 = vmatpush1.bf16.msra.mxu0 %v148
    %341 = vmatprep.subr.bf16.mxu0 %v147
    %342 = vmatpush1.bf16.msra.mxu0 %v146
    %343 = vmatprep.subr.bf16.mxu0 %v145
    %344 = vmatpush1.bf16.msra.mxu0 %v144
    %345 = vmatprep.subr.bf16.mxu0 0
    %346 = vmatpush2.bf16.msra.mxu0 0
    %347 = vmatprep.subr.bf16.mxu0 0
    %348 = vmatpush2.bf16.msra.mxu0 0
    %349 = vmatprep.subr.bf16.mxu0 0
    %350 = vmatpush2.bf16.msra.mxu0 0
    %351 = vmatprep.subr.bf16.mxu0 0
    %352 = vmatpush2.bf16.msra.mxu0 0
    %353 = vmatprep.subr.bf16.mxu0 0
    %354 = vmatpush2.bf16.msra.mxu0 0
    %355 = vmatprep.subr.bf16.mxu0 0
    %356 = vmatpush2.bf16.msra.mxu0 0
    %357 = vmatprep.subr.bf16.mxu0 0
    %358 = vmatpush2.bf16.msra.mxu0 0
    %359 = vmatprep.subr.bf16.mxu0 0
    %360 = vmatpush2.bf16.msra.mxu0 0
    %361 = vmatprep.mubr.bf16.mxu0 0
    %362 = vmatmul.mubr.bf16.gmra.mxu0 %v327
    %v363 = vpop.f32.mrf.mxu0
    %v364 = vadd.f32 0.0, %v363
    %v365 = vpop.f32.mrf.mxu0
    %v366 = vadd.f32 0.0, %v365
    %v367 = vpop.f32.mrf.mxu0
    %v368 = vpop.f32.mrf.mxu0
    %369 = vdwg.mxu0
    %v372 = vrot.slane %v364, 4
    %v373 = vrot.slane %v366, 4
    %v376 = vadd.f32 %v104, %v372
    %v377 = vadd.f32 %v106, %v373
    %v378 = vxor.u32 %v376, 2147483648
    %v379 = vxor.u32 %v377, 2147483648
    %v380 = vmul.f32 %v378, 1.442695
    %v381 = vpow.pop %v380
    %v382 = vmul.f32 %v379, 1.442695
    %v383 = vpow.pop %v382
    %v384 = vadd.f32 %v381, 1.0
    %v385 = vadd.f32 %v383, 1.0
    %v386 = vrcp.pop %v384
    %v387 = vmul.f32 1.0, %v386
    %v388 = vrcp.pop %v385
    %v389 = vmul.f32 1.0, %v388
    %v390 = vtanh.pop %v377
    %v392 = vrot.slane %v316, 6
    %v394 = vmul.f32 %v387, %v392
    %396 = vrot.lane.b32.xlu0 %v390, 64
    %v397 = vpop.permute.xlu0 %396
    %v399 = vmul.f32 %v387, %v397
    %401 = vrot.lane.b32.xlu0 %v399, 64
    %v402 = vpop.permute.xlu0 %401
    %v404 = vadd.f32 %v394, %v402
    %v405 = vtanh.pop %v404
    %407 = vrot.lane.b32.xlu0 %v405, 64
    %v408 = vpop.permute.xlu0 %407
    %v410 = vmul.f32 %v389, %v408
    %v411 = vpack.c.bf16 %v410, %v410
    %v413 = vrot.slane %v411, 2
    %v415 = vsel %vm160, %v413, 0
    %417 = vmatprep.subr.bf16.mxu0 0
    %418 = vmatpush1.bf16.msra.mxu0 0
    %419 = vmatprep.subr.bf16.mxu0 0
    %420 = vmatpush1.bf16.msra.mxu0 0
    %421 = vmatprep.subr.bf16.mxu0 0
    %422 = vmatpush1.bf16.msra.mxu0 0
    %423 = vmatprep.subr.bf16.mxu0 0
    %424 = vmatpush1.bf16.msra.mxu0 0
    %425 = vmatprep.subr.bf16.mxu0 %v151
    %426 = vmatpush1.bf16.msra.mxu0 %v150
    %427 = vmatprep.subr.bf16.mxu0 %v149
    %428 = vmatpush1.bf16.msra.mxu0 %v148
    %429 = vmatprep.subr.bf16.mxu0 %v147
    %430 = vmatpush1.bf16.msra.mxu0 %v146
    %431 = vmatprep.subr.bf16.mxu0 %v145
    %432 = vmatpush1.bf16.msra.mxu0 %v144
    %433 = vmatprep.subr.bf16.mxu0 0
    %434 = vmatpush2.bf16.msra.mxu0 0
    %435 = vmatprep.subr.bf16.mxu0 0
    %436 = vmatpush2.bf16.msra.mxu0 0
    %437 = vmatprep.subr.bf16.mxu0 0
    %438 = vmatpush2.bf16.msra.mxu0 0
    %439 = vmatprep.subr.bf16.mxu0 0
    %440 = vmatpush2.bf16.msra.mxu0 0
    %441 = vmatprep.subr.bf16.mxu0 0
    %442 = vmatpush2.bf16.msra.mxu0 0
    %443 = vmatprep.subr.bf16.mxu0 0
    %444 = vmatpush2.bf16.msra.mxu0 0
    %445 = vmatprep.subr.bf16.mxu0 0
    %446 = vmatpush2.bf16.msra.mxu0 0
    %447 = vmatprep.subr.bf16.mxu0 0
    %448 = vmatpush2.bf16.msra.mxu0 0
    %449 = vmatprep.mubr.bf16.mxu0 0
    %450 = vmatmul.mubr.bf16.gmra.mxu0 %v415
    %v451 = vpop.f32.mrf.mxu0
    %v452 = vadd.f32 0.0, %v451
    %v453 = vpop.f32.mrf.mxu0
    %v454 = vadd.f32 0.0, %v453
    %v455 = vpop.f32.mrf.mxu0
    %v456 = vpop.f32.mrf.mxu0
    %457 = vdwg.mxu0
    %v460 = vrot.slane %v452, 2
    %v461 = vrot.slane %v454, 2
    %v464 = vadd.f32 %v104, %v460
    %v465 = vadd.f32 %v106, %v461
    %v466 = vxor.u32 %v464, 2147483648
    %v467 = vxor.u32 %v465, 2147483648
    %v468 = vmul.f32 %v466, 1.442695
    %v469 = vpow.pop %v468
    %v470 = vmul.f32 %v467, 1.442695
    %v471 = vpow.pop %v470
    %v472 = vadd.f32 %v469, 1.0
    %v473 = vadd.f32 %v471, 1.0
    %v474 = vrcp.pop %v472
    %v475 = vmul.f32 1.0, %v474
    %v476 = vrcp.pop %v473
    %v477 = vmul.f32 1.0, %v476
    %v478 = vtanh.pop %v465
    %v480 = vrot.slane %v404, 6
    %v482 = vmul.f32 %v475, %v480
    %484 = vrot.lane.b32.xlu0 %v478, 64
    %v485 = vpop.permute.xlu0 %484
    %v487 = vmul.f32 %v475, %v485
    %489 = vrot.lane.b32.xlu0 %v487, 64
    %v490 = vpop.permute.xlu0 %489
    %v492 = vadd.f32 %v482, %v490
    %v493 = vtanh.pop %v492
    %495 = vrot.lane.b32.xlu0 %v493, 64
    %v496 = vpop.permute.xlu0 %495
    %v498 = vmul.f32 %v477, %v496
    %v499 = vpack.c.bf16 %v498, %v498
    %v501 = vrot.slane %v499, 3
    %v503 = vsel %vm160, %v501, 0
    %505 = vmatprep.subr.bf16.mxu0 0
    %506 = vmatpush1.bf16.msra.mxu0 0
    %507 = vmatprep.subr.bf16.mxu0 0
    %508 = vmatpush1.bf16.msra.mxu0 0
    %509 = vmatprep.subr.bf16.mxu0 0
    %510 = vmatpush1.bf16.msra.mxu0 0
    %511 = vmatprep.subr.bf16.mxu0 0
    %512 = vmatpush1.bf16.msra.mxu0 0
    %513 = vmatprep.subr.bf16.mxu0 %v151
    %514 = vmatpush1.bf16.msra.mxu0 %v150
    %515 = vmatprep.subr.bf16.mxu0 %v149
    %516 = vmatpush1.bf16.msra.mxu0 %v148
    %517 = vmatprep.subr.bf16.mxu0 %v147
    %518 = vmatpush1.bf16.msra.mxu0 %v146
    %519 = vmatprep.subr.bf16.mxu0 %v145
    %520 = vmatpush1.bf16.msra.mxu0 %v144
    %521 = vmatprep.subr.bf16.mxu0 0
    %522 = vmatpush2.bf16.msra.mxu0 0
    %523 = vmatprep.subr.bf16.mxu0 0
    %524 = vmatpush2.bf16.msra.mxu0 0
    %525 = vmatprep.subr.bf16.mxu0 0
    %526 = vmatpush2.bf16.msra.mxu0 0
    %527 = vmatprep.subr.bf16.mxu0 0
    %528 = vmatpush2.bf16.msra.mxu0 0
    %529 = vmatprep.subr.bf16.mxu0 0
    %530 = vmatpush2.bf16.msra.mxu0 0
    %531 = vmatprep.subr.bf16.mxu0 0
    %532 = vmatpush2.bf16.msra.mxu0 0
    %533 = vmatprep.subr.bf16.mxu0 0
    %534 = vmatpush2.bf16.msra.mxu0 0
    %535 = vmatprep.subr.bf16.mxu0 0
    %536 = vmatpush2.bf16.msra.mxu0 0
    %537 = vmatprep.mubr.bf16.mxu0 0
    %538 = vmatmul.mubr.bf16.gmra.mxu0 %v503
    %v539 = vpop.f32.mrf.mxu0
    %v540 = vadd.f32 0.0, %v539
    %v541 = vpop.f32.mrf.mxu0
    %v542 = vadd.f32 0.0, %v541
    %v543 = vpop.f32.mrf.mxu0
    %v544 = vpop.f32.mrf.mxu0
    %545 = vdwg.mxu0
    %v546 = vadd.f32 %v108, %v540
    %v547 = vadd.f32 %v110, %v542
    %v548 = vxor.u32 %v546, 2147483648
    %v549 = vxor.u32 %v547, 2147483648
    %v550 = vmul.f32 %v548, 1.442695
    %v551 = vpow.pop %v550
    %v552 = vmul.f32 %v549, 1.442695
    %v553 = vpow.pop %v552
    %v554 = vadd.f32 %v551, 1.0
    %v555 = vadd.f32 %v553, 1.0
    %v556 = vrcp.pop %v554
    %v557 = vmul.f32 1.0, %v556
    %v558 = vrcp.pop %v555
    %v559 = vmul.f32 1.0, %v558
    %v560 = vtanh.pop %v547
    %v562 = vrot.slane %v492, 6
    %v564 = vmul.f32 %v557, %v562
    %566 = vrot.lane.b32.xlu0 %v560, 64
    %v567 = vpop.permute.xlu0 %566
    %v569 = vmul.f32 %v557, %v567
    %571 = vrot.lane.b32.xlu0 %v569, 64
    %v572 = vpop.permute.xlu0 %571
    %v574 = vadd.f32 %v564, %v572
    %v575 = vtanh.pop %v574
    %577 = vrot.lane.b32.xlu0 %v575, 64
    %v578 = vpop.permute.xlu0 %577
    %v580 = vmul.f32 %v559, %v578
    %v581 = vpack.c.bf16 %v580, %v580
    %v583 = vsel %vm160, %v581, 0
    %585 = vmatprep.subr.bf16.mxu0 0
    %586 = vmatpush1.bf16.msra.mxu0 0
    %587 = vmatprep.subr.bf16.mxu0 0
    %588 = vmatpush1.bf16.msra.mxu0 0
    %589 = vmatprep.subr.bf16.mxu0 0
    %590 = vmatpush1.bf16.msra.mxu0 0
    %591 = vmatprep.subr.bf16.mxu0 0
    %592 = vmatpush1.bf16.msra.mxu0 0
    %593 = vmatprep.subr.bf16.mxu0 %v151
    %594 = vmatpush1.bf16.msra.mxu0 %v150
    %595 = vmatprep.subr.bf16.mxu0 %v149
    %596 = vmatpush1.bf16.msra.mxu0 %v148
    %597 = vmatprep.subr.bf16.mxu0 %v147
    %598 = vmatpush1.bf16.msra.mxu0 %v146
    %599 = vmatprep.subr.bf16.mxu0 %v145
    %600 = vmatpush1.bf16.msra.mxu0 %v144
    %601 = vmatprep.subr.bf16.mxu0 0
    %602 = vmatpush2.bf16.msra.mxu0 0
    %603 = vmatprep.subr.bf16.mxu0 0
    %604 = vmatpush2.bf16.msra.mxu0 0
    %605 = vmatprep.subr.bf16.mxu0 0
    %606 = vmatpush2.bf16.msra.mxu0 0
    %607 = vmatprep.subr.bf16.mxu0 0
    %608 = vmatpush2.bf16.msra.mxu0 0
    %609 = vmatprep.subr.bf16.mxu0 0
    %610 = vmatpush2.bf16.msra.mxu0 0
    %611 = vmatprep.subr.bf16.mxu0 0
    %612 = vmatpush2.bf16.msra.mxu0 0
    %613 = vmatprep.subr.bf16.mxu0 0
    %614 = vmatpush2.bf16.msra.mxu0 0
    %615 = vmatprep.subr.bf16.mxu0 0
    %616 = vmatpush2.bf16.msra.mxu0 0
    %617 = vmatprep.mubr.bf16.mxu0 0
    %618 = vmatmul.mubr.bf16.gmra.mxu0 %v583
    %v619 = vpop.f32.mrf.mxu0
    %v620 = vadd.f32 0.0, %v619
    %v621 = vpop.f32.mrf.mxu0
    %v622 = vadd.f32 0.0, %v621
    %v623 = vpop.f32.mrf.mxu0
    %v624 = vpop.f32.mrf.mxu0
    %625 = vdwg.mxu0
    %v628 = vrot.slane %v620, 6
    %v629 = vrot.slane %v622, 6
    %v632 = vadd.f32 %v108, %v628
    %v633 = vadd.f32 %v110, %v629
    %v634 = vxor.u32 %v632, 2147483648
    %v635 = vxor.u32 %v633, 2147483648
    %v636 = vmul.f32 %v634, 1.442695
    %v637 = vpow.pop %v636
    %v638 = vmul.f32 %v635, 1.442695
    %v639 = vpow.pop %v638
    %v640 = vadd.f32 %v637, 1.0
    %v641 = vadd.f32 %v639, 1.0
    %v642 = vrcp.pop %v640
    %v643 = vmul.f32 1.0, %v642
    %v644 = vrcp.pop %v641
    %v645 = vmul.f32 1.0, %v644
    %v646 = vtanh.pop %v633
    %v648 = vrot.slane %v574, 6
    %v650 = vmul.f32 %v643, %v648
    %652 = vrot.lane.b32.xlu0 %v646, 64
    %v653 = vpop.permute.xlu0 %652
    %v655 = vmul.f32 %v643, %v653
    %657 = vrot.lane.b32.xlu0 %v655, 64
    %v658 = vpop.permute.xlu0 %657
    %v660 = vadd.f32 %v650, %v658
    %v661 = vtanh.pop %v660
    %663 = vrot.lane.b32.xlu0 %v661, 64
    %v664 = vpop.permute.xlu0 %663
    %v666 = vmul.f32 %v645, %v664
    %v667 = vpack.c.bf16 %v666, %v666
    %v669 = vrot.slane %v667, 1
    %v671 = vsel %vm160, %v669, 0
    %673 = vmatprep.subr.bf16.mxu0 0
    %674 = vmatpush1.bf16.msra.mxu0 0
    %675 = vmatprep.subr.bf16.mxu0 0
    %676 = vmatpush1.bf16.msra.mxu0 0
    %677 = vmatprep.subr.bf16.mxu0 0
    %678 = vmatpush1.bf16.msra.mxu0 0
    %679 = vmatprep.subr.bf16.mxu0 0
    %680 = vmatpush1.bf16.msra.mxu0 0
    %681 = vmatprep.subr.bf16.mxu0 %v151
    %682 = vmatpush1.bf16.msra.mxu0 %v150
    %683 = vmatprep.subr.bf16.mxu0 %v149
    %684 = vmatpush1.bf16.msra.mxu0 %v148
    %685 = vmatprep.subr.bf16.mxu0 %v147
    %686 = vmatpush1.bf16.msra.mxu0 %v146
    %687 = vmatprep.subr.bf16.mxu0 %v145
    %688 = vmatpush1.bf16.msra.mxu0 %v144
    %689 = vmatprep.subr.bf16.mxu0 0
    %690 = vmatpush2.bf16.msra.mxu0 0
    %691 = vmatprep.subr.bf16.mxu0 0
    %692 = vmatpush2.bf16.msra.mxu0 0
    %693 = vmatprep.subr.bf16.mxu0 0
    %694 = vmatpush2.bf16.msra.mxu0 0
    %695 = vmatprep.subr.bf16.mxu0 0
    %696 = vmatpush2.bf16.msra.mxu0 0
    %697 = vmatprep.subr.bf16.mxu0 0
    %698 = vmatpush2.bf16.msra.mxu0 0
    %699 = vmatprep.subr.bf16.mxu0 0
    %700 = vmatpush2.bf16.msra.mxu0 0
    %701 = vmatprep.subr.bf16.mxu0 0
    %702 = vmatpush2.bf16.msra.mxu0 0
    %703 = vmatprep.subr.bf16.mxu0 0
    %704 = vmatpush2.bf16.msra.mxu0 0
    %705 = vmatprep.mubr.bf16.mxu0 0
    %706 = vmatmul.mubr.bf16.gmra.mxu0 %v671
    %v707 = vpop.f32.mrf.mxu0
    %v708 = vadd.f32 0.0, %v707
    %v709 = vpop.f32.mrf.mxu0
    %v710 = vadd.f32 0.0, %v709
    %v711 = vpop.f32.mrf.mxu0
    %v712 = vpop.f32.mrf.mxu0
    %713 = vdwg.mxu0
    %v716 = vrot.slane %v708, 4
    %v717 = vrot.slane %v710, 4
    %v720 = vadd.f32 %v108, %v716
    %v721 = vadd.f32 %v110, %v717
    %v722 = vxor.u32 %v720, 2147483648
    %v723 = vxor.u32 %v721, 2147483648
    %v724 = vmul.f32 %v722, 1.442695
    %v725 = vpow.pop %v724
    %v726 = vmul.f32 %v723, 1.442695
    %v727 = vpow.pop %v726
    %v728 = vadd.f32 %v725, 1.0
    %v729 = vadd.f32 %v727, 1.0
    %v730 = vrcp.pop %v728
    %v731 = vmul.f32 1.0, %v730
    %v732 = vrcp.pop %v729
    %v733 = vmul.f32 1.0, %v732
    %v734 = vtanh.pop %v721
    %v736 = vrot.slane %v660, 6
    %v738 = vmul.f32 %v731, %v736
    %740 = vrot.lane.b32.xlu0 %v734, 64
    %v741 = vpop.permute.xlu0 %740
    %v743 = vmul.f32 %v731, %v741
    %745 = vrot.lane.b32.xlu0 %v743, 64
    %v746 = vpop.permute.xlu0 %745
    %v748 = vadd.f32 %v738, %v746
    %v749 = vtanh.pop %v748
    %751 = vrot.lane.b32.xlu0 %v749, 64
    %v752 = vpop.permute.xlu0 %751
    %v754 = vmul.f32 %v733, %v752
    %v755 = vpack.c.bf16 %v754, %v754
    %v757 = vrot.slane %v755, 2
    %v759 = vsel %vm160, %v757, 0
    %761 = vmatprep.subr.bf16.mxu0 0
    %762 = vmatpush1.bf16.msra.mxu0 0
    %763 = vmatprep.subr.bf16.mxu0 0
    %764 = vmatpush1.bf16.msra.mxu0 0
    %765 = vmatprep.subr.bf16.mxu0 0
    %766 = vmatpush1.bf16.msra.mxu0 0
    %767 = vmatprep.subr.bf16.mxu0 0
    %768 = vmatpush1.bf16.msra.mxu0 0
    %769 = vmatprep.subr.bf16.mxu0 %v151
    %770 = vmatpush1.bf16.msra.mxu0 %v150
    %771 = vmatprep.subr.bf16.mxu0 %v149
    %772 = vmatpush1.bf16.msra.mxu0 %v148
    %773 = vmatprep.subr.bf16.mxu0 %v147
    %774 = vmatpush1.bf16.msra.mxu0 %v146
    %775 = vmatprep.subr.bf16.mxu0 %v145
    %776 = vmatpush1.bf16.msra.mxu0 %v144
    %777 = vmatprep.subr.bf16.mxu0 0
    %778 = vmatpush2.bf16.msra.mxu0 0
    %779 = vmatprep.subr.bf16.mxu0 0
    %780 = vmatpush2.bf16.msra.mxu0 0
    %781 = vmatprep.subr.bf16.mxu0 0
    %782 = vmatpush2.bf16.msra.mxu0 0
    %783 = vmatprep.subr.bf16.mxu0 0
    %784 = vmatpush2.bf16.msra.mxu0 0
    %785 = vmatprep.subr.bf16.mxu0 0
    %786 = vmatpush2.bf16.msra.mxu0 0
    %787 = vmatprep.subr.bf16.mxu0 0
    %788 = vmatpush2.bf16.msra.mxu0 0
    %789 = vmatprep.subr.bf16.mxu0 0
    %790 = vmatpush2.bf16.msra.mxu0 0
    %791 = vmatprep.subr.bf16.mxu0 0
    %792 = vmatpush2.bf16.msra.mxu0 0
    %793 = vmatprep.mubr.bf16.mxu0 0
    %794 = vmatmul.mubr.bf16.gmra.mxu0 %v759
    %v795 = vpop.f32.mrf.mxu0
    %v796 = vadd.f32 0.0, %v795
    %v797 = vpop.f32.mrf.mxu0
    %v798 = vadd.f32 0.0, %v797
    %v799 = vpop.f32.mrf.mxu0
    %v800 = vpop.f32.mrf.mxu0
    %801 = vdwg.mxu0
    %v804 = vrot.slane %v796, 2
    %v805 = vrot.slane %v798, 2
    %v808 = vadd.f32 %v108, %v804
    %v809 = vadd.f32 %v110, %v805
    %v810 = vxor.u32 %v808, 2147483648
    %v811 = vxor.u32 %v809, 2147483648
    %v812 = vmul.f32 %v810, 1.442695
    %v813 = vpow.pop %v812
    %v814 = vmul.f32 %v811, 1.442695
    %v815 = vpow.pop %v814
    %v816 = vadd.f32 %v813, 1.0
    %v817 = vadd.f32 %v815, 1.0
    %v818 = vrcp.pop %v816
    %v819 = vmul.f32 1.0, %v818
    %v820 = vrcp.pop %v817
    %v821 = vmul.f32 1.0, %v820
    %v822 = vtanh.pop %v809
    %v824 = vrot.slane %v748, 6
    %v826 = vmul.f32 %v819, %v824
    %828 = vrot.lane.b32.xlu0 %v822, 64
    %v829 = vpop.permute.xlu0 %828
    %v831 = vmul.f32 %v819, %v829
    %833 = vrot.lane.b32.xlu0 %v831, 64
    %v834 = vpop.permute.xlu0 %833
    %v836 = vadd.f32 %v826, %v834
    %v837 = vtanh.pop %v836
    %839 = vrot.lane.b32.xlu0 %v837, 64
    %v840 = vpop.permute.xlu0 %839
    %v842 = vmul.f32 %v821, %v840
    %vm843 = vcmask 1041408
    %v844 = vsel %vm843, %v236, %v322
    %v845 = vsel %vm62, %v844, %v410
    %vm846 = vcmask 1045504
    %v847 = vsel %vm846, %v845, %v498
    %v848 = vsel %vm843, %v580, %v666
    %v849 = vsel %vm62, %v848, %v754
    %v850 = vsel %vm846, %v849, %v842
    %851 = vst.msk [vmem:[#allocation5] sm:$0xff] %vm160, %v847
    %852 = vst.msk [vmem:[#allocation5 + $0x8] sm:$0xff] %vm160, %v850
    // Predicated region
    $region22: #{tpu_custom_call.1} parent=1 // pred_check
      _
    $region23: #{tpu_custom_call.1} parent=1 // pred_check_branch
      %854 = sbr.rel (0) target = $region25
    $region24: #{tpu_custom_call.1} parent=1 // pred_region
      %s856 = ssub.s32 256, 256
      %857 = vsyncadd [#allocation4], %s856
      %s858 = sshll.u32 [#allocation5], 4
      %s859 = int_to_ptr.vmem [resolvable:$true] %s858
      %864 = dma.vmem_to_hbm [thread:$0]  %s859, 256, %s4, [#allocation4], 128, 128, 8
    $region25: #{tpu_custom_call.1} parent=1 // pred_fallthru
      _
    // Predicated region
    $region26: #{tpu_custom_call.1} parent=1 // pred_check
      _
    $region27: #{tpu_custom_call.1} parent=1 // pred_check_branch
      %866 = sbr.rel (0) target = $region29
    $region28: #{tpu_custom_call.1} parent=1 // pred_region
      %867 = dma.done [#allocation4], 256
    $region29: #{tpu_custom_call.1} parent=1 // pred_fallthru
      _
    %868 = vsyncpa [#allocation3], 1
    %869 = vsyncpa [#allocation4], 1

</llo_original>
